<compile_context>
chip_gen: v6e
topology: v6e:2x2x1
jax: 0.10.0
libtpu: 0.0.40
codegen_flags: <defaults>
</compile_context>

<pallas_src>
import functools
import math

import jax
import jax.numpy as jnp
from jax.experimental import pallas as pl
from jax.experimental.pallas import tpu as pltpu

EPS = 1e-5
LANE = 128         # TPU lane width: every feature dim padded to a multiple of this
SUBLANE_BF16 = 16  # one bf16 vreg holds 16 sublanes: pad the batch dim to this


def _pad_to(n, m):
    return ((n + m - 1) // m) * m


def _vmem_cap_bytes():
    """Generation-aware scoped-VMEM cap (physical minus headroom); safe fallback."""
    try:
        info = pltpu.get_tpu_info()
        phys = getattr(info, "vmem_capacity_bytes", None)
        if phys:
            return int(phys * 3 // 4)       # leave headroom for compiler scratch
    except Exception:
        pass
    return 48 << 20                          # conservative: fits v7x's 64 MiB physical


def _make_net_kernel(num_layers, batch_true):
    """Fused kernel: L x (Linear[no bias] + BatchNorm(batch stats) + ReLU) -> Linear+bias.

    refs = (x, w0, w1, ..., w_{L-1}, w_out, b_out, out)
      x     : (B_pad, F_pad)    bf16 -- zero padded, lane-dense
      w_i   : (in_pad, out_pad) bf16 -- pre-transposed, zero padded, NO hidden bias
      w_out : (hid_pad, C_pad)  bf16
      b_out : (1, C_pad)        f32
      out   : (B_pad, C_pad)    f32  -- lane-dense; sliced back in the wrapper
    """
    inv_b = 1.0 / float(batch_true)

    def kernel(*refs):
        x_ref = refs[0]
        o_ref = refs[-1]
        p = refs[1:-1]

        b_pad = x_ref.shape[0]
        # Row weights for masked batch statistics: 1/B on real rows, 0 on padded rows,
        # so padded rows never perturb the BatchNorm statistics. Built in-kernel.
        rows = jax.lax.broadcasted_iota(jnp.int32, (b_pad, 1), 0) < batch_true
        wm = jnp.where(rows, jnp.float32(inv_b), jnp.float32(0.0))

        h = x_ref[...]                         # bf16 activations feed the MXU
        for i in range(num_layers):
            w = p[i][...]                      # bf16 (in_pad, out_pad)
            # Linear on the MXU: bf16 x bf16 -> f32 accumulate. Hidden bias omitted:
            # it is exactly cancelled by the BatchNorm mean subtraction below.
            acc = jnp.dot(h, w, preferred_element_type=jnp.float32)
            # BatchNorm1d(track_running_stats=False) with identity affine:
            # centered two-pass masked batch statistics (biased variance), math in f32.
            mean = jnp.sum(acc * wm, axis=0, keepdims=True)        # E[h]
            cen = acc - mean
            var = jnp.sum(cen * cen * wm, axis=0, keepdims=True)   # E[(h-E[h])^2]
            hn = cen * jax.lax.rsqrt(var + EPS)                    # rsqrt -> EUP slot
            # ReLU, then cast back to bf16 for the next MXU pass.
            h = jnp.maximum(hn, 0.0).astype(jnp.bfloat16)
            # TODO(synk): dropout omitted (args.dropout chosen as 0.0; identity in eval anyway)

        wo = p[num_layers][...]
        bo = p[num_layers + 1][...]
        o_ref[...] = (jnp.dot(h, wo, preferred_element_type=jnp.float32) + bo).astype(
            o_ref.dtype
        )

    return kernel


def prepare_params(torch_style_params):
    """ONE-TIME parameter prep (do not call per forward step).

    Takes PyTorch-layout params [w0 (out,in), b0 (out,), ..., w_out, b_out]; returns
    [w0 (in_pad,out_pad) bf16, ..., w_out (hid_pad,cls_pad) bf16, b_out (1,cls_pad) f32].
    Hidden-layer biases are DROPPED (exactly cancelled by the BatchNorm mean
    subtraction); only the final layer's bias is kept. Weights are pre-transposed
    for (batch,in) @ (in,out), zero-padded to 128-lane multiples, cast to bf16.
    """
    n_pairs = len(torch_style_params) // 2
    prepared = []
    for i in range(n_pairs):
        w = jnp.asarray(torch_style_params[2 * i], jnp.float32)       # (out, in)
        b = jnp.asarray(torch_style_params[2 * i + 1], jnp.float32)   # (out,)
        out_f, in_f = w.shape
        in_p, out_p = _pad_to(in_f, LANE), _pad_to(out_f, LANE)
        wt = jnp.pad(w.T, ((0, in_p - in_f), (0, out_p - out_f))).astype(jnp.bfloat16)
        prepared.append(wt)
        if i == n_pairs - 1:                                           # final layer only
            prepared.append(jnp.pad(b, (0, out_p - out_f)).reshape(1, out_p))
    return prepared


@functools.partial(jax.jit, static_argnames=("num_layers", "num_classes"))
def net_forward(x_nchw, prepared_params, *, num_layers, num_classes):
    """prepared_params: output of prepare_params() (already transposed/padded/bf16)."""
    B = x_nchw.shape[0]
    feat = math.prod(x_nchw.shape[1:])
    in_pad = prepared_params[0].shape[0]
    cls_pad = prepared_params[-1].shape[1]
    b_pad = _pad_to(max(B, SUBLANE_BF16), SUBLANE_BF16)

    # flatten == x.view(x.size(0), -1); zero-pad batch (sublanes) and features (lanes).
    x2d = x_nchw.reshape(B, feat).astype(jnp.bfloat16)
    x_p = jnp.pad(x2d, ((0, b_pad - B), (0, in_pad - feat)))

    inputs = [x_p] + list(prepared_params)
    in_bytes = sum(math.prod(a.shape) * a.dtype.itemsize for a in inputs)
    out_bytes = b_pad * cls_pad * 4
    flops = 0
    for i in range(num_layers + 1):
        k, n = prepared_params[i].shape
        flops += 2 * b_pad * k * n
    hid_pad = prepared_params[0].shape[1]
    transcendentals = num_layers * hid_pad          # one rsqrt per hidden feature/layer

    vmem_spec = pl.BlockSpec(memory_space=pltpu.MemorySpace.VMEM)
    out_p = pl.pallas_call(
        _make_net_kernel(num_layers, B),
        out_shape=jax.ShapeDtypeStruct((b_pad, cls_pad), jnp.float32),
        in_specs=[vmem_spec] * len(inputs),
        out_specs=vmem_spec,
        compiler_params=pltpu.CompilerParams(
            vmem_limit_bytes=int(
                min(2 * (in_bytes + out_bytes) + (8 << 20), _vmem_cap_bytes())
            )
        ),
        cost_estimate=pl.CostEstimate(
            flops=flops,
            transcendentals=transcendentals,
            bytes_accessed=in_bytes + out_bytes,
        ),
    )(*inputs)
    return out_p[:B, :num_classes]


def _init_linear(key, fan_in, fan_out):
    """Deterministic init mimicking torch.nn.Linear default (uniform +-1/sqrt(fan_in))."""
    kw, kb = jax.random.split(key)
    bound = 1.0 / (fan_in ** 0.5)
    w = jax.random.uniform(kw, (fan_out, fan_in), jnp.float32, -bound, bound)
    b = jax.random.uniform(kb, (fan_out,), jnp.float32, -bound, bound)
    return w, b


def _reference_forward_f32(x_nchw, params, num_layers):
    """Pure f32 reference with the exact PyTorch-module math (incl. hidden biases)."""
    B = x_nchw.shape[0]
    h = x_nchw.reshape(B, -1).astype(jnp.float32)
    for i in range(num_layers):
        w, b = params[2 * i], params[2 * i + 1]
        h = h @ w.T + b
        mu = jnp.mean(h, axis=0, keepdims=True)
        var = jnp.mean((h - mu) ** 2, axis=0, keepdims=True)
        h = (h - mu) * jax.lax.rsqrt(var + EPS)
        h = jnp.maximum(h, 0.0)
    wo, bo = params[-2], params[-1]
    return h @ wo.T + bo


def _reference_forward_bf16(x_nchw, params, num_layers):
    """Mirrors the kernel's numerics (bf16 matmul/f32 acc, no hidden bias, two-pass BN)."""
    B = x_nchw.shape[0]
    h = x_nchw.reshape(B, -1).astype(jnp.bfloat16)
    for i in range(num_layers):
        w = params[2 * i]
        acc = jnp.dot(h, w.T.astype(jnp.bfloat16), preferred_element_type=jnp.float32)
        mean = jnp.mean(acc, axis=0, keepdims=True)
        cen = acc - mean
        var = jnp.mean(cen * cen, axis=0, keepdims=True)
        h = jnp.maximum(cen * jax.lax.rsqrt(var + EPS), 0.0).astype(jnp.bfloat16)
    wo, bo = params[-2], params[-1]
    return jnp.dot(h, wo.T.astype(jnp.bfloat16), preferred_element_type=jnp.float32) + bo


if __name__ == "__main__":
    # Small shapes consistent with Net(num_layers, num_hidden, input_dim, input_ch, num_classes)
    batch = 2
    input_ch = 4
    input_dim = 16
    num_hidden = 32     # NOTE: a multiple of 128 (ideally 256) would fill the MXU; model config.
    num_layers = 2
    num_classes = 10

    key = jax.random.PRNGKey(0)
    kx, *kl = jax.random.split(key, 2 + num_layers)

    x = jax.random.normal(kx, (batch, input_ch, input_dim, input_dim), jnp.float32)

    params = []
    fan_in = input_dim * input_dim * input_ch
    for i in range(num_layers):
        w, b = _init_linear(kl[i], fan_in, num_hidden)
        params += [w, b]
        fan_in = num_hidden
    wo, bo = _init_linear(kl[num_layers], num_hidden, num_classes)
    params += [wo, bo]

    # One-time prep: transpose + pad + bf16 cast, hidden biases dropped.
    prepared = prepare_params(params)

    out = net_forward(x, prepared, num_layers=num_layers, num_classes=num_classes)
    out = jax.block_until_ready(out)
    assert out.shape == (batch, num_classes)

    ref_tight = _reference_forward_bf16(x, params, num_layers)   # same numerics as kernel
    ref_f32 = _reference_forward_f32(x, params, num_layers)      # original module math
    assert jnp.allclose(out, ref_tight, atol=2e-3, rtol=2e-3), "kernel mismatch vs bf16 reference"
    assert jnp.allclose(out, ref_f32, atol=5e-2, rtol=5e-2), "kernel drifted from f32 reference"

    print("KERNEL_OK")
</pallas_src>

<mosaic_0001>
module attributes {stable_mosaic.version = 11 : i64} {
  func.func @kernel(%arg0: memref<16x1024xbf16, #tpu.memory_space<vmem>>, %arg1: memref<1024x128xbf16, #tpu.memory_space<vmem>>, %arg2: memref<128x128xbf16, #tpu.memory_space<vmem>>, %arg3: memref<128x128xbf16, #tpu.memory_space<vmem>>, %arg4: memref<1x128xf32, #tpu.memory_space<vmem>>, %arg5: memref<16x128xf32, #tpu.memory_space<vmem>>) attributes {dimension_semantics = [], scalar_prefetch = 0 : i64, scratch_operands = 0 : i64, tpu.core_type = #tpu.core_type<tc>} {
    %0 = tpu.iota {dimensions = array<i32: 0>} : vector<16x1xi32>
    %c2_i32 = arith.constant 2 : i32
    %1 = vector.broadcast %c2_i32 : i32 to vector<16x1xi32>
    %2 = arith.cmpi slt, %0, %1 : vector<16x1xi32>
    %cst = arith.constant 5.000000e-01 : f32
    %cst_0 = arith.constant 0.000000e+00 : f32
    %3 = vector.broadcast %cst : f32 to vector<16x1xf32>
    %4 = vector.broadcast %cst_0 : f32 to vector<16x1xf32>
    %5 = arith.select %2, %3, %4 : vector<16x1xi1>, vector<16x1xf32>
    %c0 = arith.constant 0 : index
    %c0_1 = arith.constant 0 : index
    %6 = vector.load %arg0[%c0, %c0_1] : memref<16x1024xbf16, #tpu.memory_space<vmem>>, vector<16x1024xbf16>
    %c0_2 = arith.constant 0 : index
    %c0_3 = arith.constant 0 : index
    %7 = vector.load %arg1[%c0_2, %c0_3] : memref<1024x128xbf16, #tpu.memory_space<vmem>>, vector<1024x128xbf16>
    %cst_4 = arith.constant dense<0.000000e+00> : vector<16x128xf32>
    %8 = tpu.matmul %6, %7, %cst_4 {dimension_numbers = #tpu.dot_dimension_numbers<[1], [0], [0], [1], [0, 0, 1, 1], [], []>} : vector<16x1024xbf16>, vector<1024x128xbf16>, vector<16x128xf32> -> vector<16x128xf32>
    %9 = vector.broadcast %5 : vector<16x1xf32> to vector<16x128xf32>
    %10 = arith.mulf %8, %9 : vector<16x128xf32>
    %cst_5 = arith.constant dense<0.000000e+00> : vector<128xf32>
    %11 = vector.multi_reduction <add>, %10, %cst_5 [0] : vector<16x128xf32> to vector<128xf32>
    %12 = vector.shape_cast %11 : vector<128xf32> to vector<1x128xf32>
    %13 = vector.broadcast %12 : vector<1x128xf32> to vector<16x128xf32>
    %14 = arith.subf %8, %13 : vector<16x128xf32>
    %15 = arith.mulf %14, %14 : vector<16x128xf32>
    %16 = vector.broadcast %5 : vector<16x1xf32> to vector<16x128xf32>
    %17 = arith.mulf %15, %16 : vector<16x128xf32>
    %cst_6 = arith.constant dense<0.000000e+00> : vector<128xf32>
    %18 = vector.multi_reduction <add>, %17, %cst_6 [0] : vector<16x128xf32> to vector<128xf32>
    %19 = vector.shape_cast %18 : vector<128xf32> to vector<1x128xf32>
    %cst_7 = arith.constant 9.99999974E-6 : f32
    %20 = vector.broadcast %cst_7 : f32 to vector<1x128xf32>
    %21 = arith.addf %19, %20 : vector<1x128xf32>
    %22 = math.rsqrt %21 : vector<1x128xf32>
    %23 = vector.broadcast %22 : vector<1x128xf32> to vector<16x128xf32>
    %24 = arith.mulf %14, %23 : vector<16x128xf32>
    %cst_8 = arith.constant 0.000000e+00 : f32
    %25 = vector.broadcast %cst_8 : f32 to vector<16x128xf32>
    %26 = arith.maximumf %24, %25 : vector<16x128xf32>
    %27 = arith.truncf %26 : vector<16x128xf32> to vector<16x128xbf16>
    %c0_9 = arith.constant 0 : index
    %c0_10 = arith.constant 0 : index
    %28 = vector.load %arg2[%c0_9, %c0_10] : memref<128x128xbf16, #tpu.memory_space<vmem>>, vector<128x128xbf16>
    %cst_11 = arith.constant dense<0.000000e+00> : vector<16x128xf32>
    %29 = tpu.matmul %27, %28, %cst_11 {dimension_numbers = #tpu.dot_dimension_numbers<[1], [0], [0], [1], [0, 0, 1, 1], [], []>} : vector<16x128xbf16>, vector<128x128xbf16>, vector<16x128xf32> -> vector<16x128xf32>
    %30 = vector.broadcast %5 : vector<16x1xf32> to vector<16x128xf32>
    %31 = arith.mulf %29, %30 : vector<16x128xf32>
    %cst_12 = arith.constant dense<0.000000e+00> : vector<128xf32>
    %32 = vector.multi_reduction <add>, %31, %cst_12 [0] : vector<16x128xf32> to vector<128xf32>
    %33 = vector.shape_cast %32 : vector<128xf32> to vector<1x128xf32>
    %34 = vector.broadcast %33 : vector<1x128xf32> to vector<16x128xf32>
    %35 = arith.subf %29, %34 : vector<16x128xf32>
    %36 = arith.mulf %35, %35 : vector<16x128xf32>
    %37 = vector.broadcast %5 : vector<16x1xf32> to vector<16x128xf32>
    %38 = arith.mulf %36, %37 : vector<16x128xf32>
    %cst_13 = arith.constant dense<0.000000e+00> : vector<128xf32>
    %39 = vector.multi_reduction <add>, %38, %cst_13 [0] : vector<16x128xf32> to vector<128xf32>
    %40 = vector.shape_cast %39 : vector<128xf32> to vector<1x128xf32>
    %cst_14 = arith.constant 9.99999974E-6 : f32
    %41 = vector.broadcast %cst_14 : f32 to vector<1x128xf32>
    %42 = arith.addf %40, %41 : vector<1x128xf32>
    %43 = math.rsqrt %42 : vector<1x128xf32>
    %44 = vector.broadcast %43 : vector<1x128xf32> to vector<16x128xf32>
    %45 = arith.mulf %35, %44 : vector<16x128xf32>
    %cst_15 = arith.constant 0.000000e+00 : f32
    %46 = vector.broadcast %cst_15 : f32 to vector<16x128xf32>
    %47 = arith.maximumf %45, %46 : vector<16x128xf32>
    %48 = arith.truncf %47 : vector<16x128xf32> to vector<16x128xbf16>
    %c0_16 = arith.constant 0 : index
    %c0_17 = arith.constant 0 : index
    %49 = vector.load %arg3[%c0_16, %c0_17] : memref<128x128xbf16, #tpu.memory_space<vmem>>, vector<128x128xbf16>
    %c0_18 = arith.constant 0 : index
    %c0_19 = arith.constant 0 : index
    %50 = vector.load %arg4[%c0_18, %c0_19] : memref<1x128xf32, #tpu.memory_space<vmem>>, vector<1x128xf32>
    %cst_20 = arith.constant dense<0.000000e+00> : vector<16x128xf32>
    %51 = tpu.matmul %48, %49, %cst_20 {dimension_numbers = #tpu.dot_dimension_numbers<[1], [0], [0], [1], [0, 0, 1, 1], [], []>} : vector<16x128xbf16>, vector<128x128xbf16>, vector<16x128xf32> -> vector<16x128xf32>
    %52 = vector.broadcast %50 : vector<1x128xf32> to vector<16x128xf32>
    %53 = arith.addf %51, %52 : vector<16x128xf32>
    %c0_21 = arith.constant 0 : index
    %c0_22 = arith.constant 0 : index
    %54 = vector.load %arg5[%c0_21, %c0_22] : memref<16x128xf32, #tpu.memory_space<vmem>>, vector<16x128xf32>
    tpu.vector_store %arg5[%c0_21, %c0_22], %53 {strides = array<i32>} : memref<16x128xf32, #tpu.memory_space<vmem>>, vector<16x128xf32>,
    return
  }
}

</mosaic_0001>

<llo_original>
// kernel: net_forward.1
$region0: #{net_forward.1}
  #allocation0 [shape = 'u32[]', space=smem, size = 0x4, offset = 0x4, fixed_abs, tag = 'smem constant byte address 0x4 - core index']
  #allocation1 [shape = 'u32[144,128]{1,0:T(1,128)}', space=vmem, size = 0x12000, scoped, tag = 'internal scratch']
  %s0 = inlined_call_operand.vmem [shape: bf16[16,1024], index: 0, kind: input, shape index: {}]
  %s1 = inlined_call_operand.hbm [shape: bf16[1024,128], index: 1, kind: input, shape index: {}]
  %s2 = inlined_call_operand.vmem [shape: bf16[128,128], index: 2, kind: input, shape index: {}]
  %s3 = inlined_call_operand.vmem [shape: bf16[128,128], index: 3, kind: input, shape index: {}]
  %s4 = inlined_call_operand.vmem [shape: f32[1,128], index: 4, kind: input, shape index: {}]
  %s5 = inlined_call_operand.vmem [shape: f32[16,128], index: 5, kind: output, shape index: {}]
  %s6 = sld [smem:[#allocation0]]
  $region34: #{net_forward.1} parent=0
    _
  %s8 = ssub.s32 1, %s6
  %s9 = scalar_select 0, %s8, %s6
  $region1: #{net_forward.1} parent=0
    #allocation2 [shape = 'u8[262144]{0}', space=vmem, size = 0x40000, scoped, tag = 'input window, operand 1, single buffered']
    #allocation3 [shape = 's32[1]{0}', space=sflag, size = 0x4, scoped, tag = 'scoped memory for net_forward.1']
    %10 = vsyncpa [#allocation3], 0
    // Predicated region
    $region2: #{net_forward.1} parent=1 // pred_check
      _
    $region3: #{net_forward.1} parent=1 // pred_check_branch
      %12 = sbr.rel (0) target = $region5
    $region4: #{net_forward.1} parent=1 // pred_region
      _
    $region5: #{net_forward.1} parent=1 // pred_fallthru
      _
    // Predicated region
    $region6: #{net_forward.1} parent=1 // pred_check
      _
    $region7: #{net_forward.1} parent=1 // pred_check_branch
      %14 = sbr.rel (0) target = $region9
    $region8: #{net_forward.1} parent=1 // pred_region
      %s16 = ssub.s32 8192, 8192
      %17 = vsyncadd [#allocation3], %s16
      %s18 = sshll.u32 [#allocation2], 4
      %s19 = int_to_ptr.vmem [resolvable:$true] %s18
      %24 = dma.hbm_to_vmem [thread:$0]  %s1, 8192, %s19, [#allocation3], 64, 64, 4
    $region9: #{net_forward.1} parent=1 // pred_fallthru
      _
    // Predicated region
    $region10: #{net_forward.1} parent=1 // pred_check
      _
    $region11: #{net_forward.1} parent=1 // pred_check_branch
      %26 = sbr.rel (0) target = $region13
    $region12: #{net_forward.1} parent=1 // pred_region
      _
    $region13: #{net_forward.1} parent=1 // pred_fallthru
      _
    // Predicated region
    $region14: #{net_forward.1} parent=1 // pred_check
      _
    $region15: #{net_forward.1} parent=1 // pred_check_branch
      %28 = sbr.rel (0) target = $region17
    $region16: #{net_forward.1} parent=1 // pred_region
      _
    $region17: #{net_forward.1} parent=1 // pred_fallthru
      _
    // Predicated region
    $region18: #{net_forward.1} parent=1 // pred_check
      _
    $region19: #{net_forward.1} parent=1 // pred_check_branch
      %30 = sbr.rel (0) target = $region21
    $region20: #{net_forward.1} parent=1 // pred_region
      _
    $region21: #{net_forward.1} parent=1 // pred_fallthru
      _
    // Predicated region
    $region22: #{net_forward.1} parent=1 // pred_check
      _
    $region23: #{net_forward.1} parent=1 // pred_check_branch
      %32 = sbr.rel (0) target = $region25
    $region24: #{net_forward.1} parent=1 // pred_region
      %33 = dma.done [#allocation3], 8192
    $region25: #{net_forward.1} parent=1 // pred_fallthru
      _
    %v35 = vlaneseq
    %v36 = vshrl.u32 %v35, 7
    %v37 = vadd.s32 %v36, 8
    %vm38 = vcmp.lt.s32.totalorder %v36, 2
    %vm39 = vcmp.lt.s32.totalorder %v37, 2
    %v40 = vsel %vm38, 0.5, 0.0
    %v41 = vsel %vm39, 0.5, 0.0
    %v42 = vld [vmem:[%s0] sm:$0xff]
    %v43 = vld [vmem:[%s0 + $0x8] sm:$0xff]
    %v44 = vld [vmem:[%s0 + $0x10] sm:$0xff]
    %v45 = vld [vmem:[%s0 + $0x18] sm:$0xff]
    %v46 = vld [vmem:[%s0 + $0x20] sm:$0xff]
    %v47 = vld [vmem:[%s0 + $0x28] sm:$0xff]
    %v48 = vld [vmem:[%s0 + $0x30] sm:$0xff]
    %v49 = vld [vmem:[%s0 + $0x38] sm:$0xff]
    %v50 = vld [vmem:[#allocation2] sm:$0xf]
    %v51 = vld [vmem:[#allocation2 + $0x4] sm:$0xf]
    %v52 = vld [vmem:[#allocation2 + $0x8] sm:$0xf]
    %v53 = vld [vmem:[#allocation2 + $0xc] sm:$0xf]
    %v54 = vld [vmem:[#allocation2 + $0x10] sm:$0xf]
    %v55 = vld [vmem:[#allocation2 + $0x14] sm:$0xf]
    %v56 = vld [vmem:[#allocation2 + $0x18] sm:$0xf]
    %v57 = vld [vmem:[#allocation2 + $0x1c] sm:$0xf]
    %v58 = vld [vmem:[#allocation2 + $0x20] sm:$0xf]
    %v59 = vld [vmem:[#allocation2 + $0x24] sm:$0xf]
    %v60 = vld [vmem:[#allocation2 + $0x28] sm:$0xf]
    %v61 = vld [vmem:[#allocation2 + $0x2c] sm:$0xf]
    %v62 = vld [vmem:[#allocation2 + $0x30] sm:$0xf]
    %v63 = vld [vmem:[#allocation2 + $0x34] sm:$0xf]
    %v64 = vld [vmem:[#allocation2 + $0x38] sm:$0xf]
    %v65 = vld [vmem:[#allocation2 + $0x3c] sm:$0xf]
    %v66 = vld [vmem:[#allocation2 + $0x40] sm:$0xf]
    %v67 = vld [vmem:[#allocation2 + $0x44] sm:$0xf]
    %v68 = vld [vmem:[#allocation2 + $0x48] sm:$0xf]
    %v69 = vld [vmem:[#allocation2 + $0x4c] sm:$0xf]
    %v70 = vld [vmem:[#allocation2 + $0x50] sm:$0xf]
    %v71 = vld [vmem:[#allocation2 + $0x54] sm:$0xf]
    %v72 = vld [vmem:[#allocation2 + $0x58] sm:$0xf]
    %v73 = vld [vmem:[#allocation2 + $0x5c] sm:$0xf]
    %v74 = vld [vmem:[#allocation2 + $0x60] sm:$0xf]
    %v75 = vld [vmem:[#allocation2 + $0x64] sm:$0xf]
    %v76 = vld [vmem:[#allocation2 + $0x68] sm:$0xf]
    %v77 = vld [vmem:[#allocation2 + $0x6c] sm:$0xf]
    %v78 = vld [vmem:[#allocation2 + $0x70] sm:$0xf]
    %v79 = vld [vmem:[#allocation2 + $0x74] sm:$0xf]
    %v80 = vld [vmem:[#allocation2 + $0x78] sm:$0xf]
    %v81 = vld [vmem:[#allocation2 + $0x7c] sm:$0xf]
    %v82 = vld [vmem:[#allocation2 + $0x80] sm:$0xf]
    %v83 = vld [vmem:[#allocation2 + $0x84] sm:$0xf]
    %v84 = vld [vmem:[#allocation2 + $0x88] sm:$0xf]
    %v85 = vld [vmem:[#allocation2 + $0x8c] sm:$0xf]
    %v86 = vld [vmem:[#allocation2 + $0x90] sm:$0xf]
    %v87 = vld [vmem:[#allocation2 + $0x94] sm:$0xf]
    %v88 = vld [vmem:[#allocation2 + $0x98] sm:$0xf]
    %v89 = vld [vmem:[#allocation2 + $0x9c] sm:$0xf]
    %v90 = vld [vmem:[#allocation2 + $0xa0] sm:$0xf]
    %v91 = vld [vmem:[#allocation2 + $0xa4] sm:$0xf]
    %v92 = vld [vmem:[#allocation2 + $0xa8] sm:$0xf]
    %v93 = vld [vmem:[#allocation2 + $0xac] sm:$0xf]
    %v94 = vld [vmem:[#allocation2 + $0xb0] sm:$0xf]
    %v95 = vld [vmem:[#allocation2 + $0xb4] sm:$0xf]
    %v96 = vld [vmem:[#allocation2 + $0xb8] sm:$0xf]
    %v97 = vld [vmem:[#allocation2 + $0xbc] sm:$0xf]
    %v98 = vld [vmem:[#allocation2 + $0xc0] sm:$0xf]
    %v99 = vld [vmem:[#allocation2 + $0xc4] sm:$0xf]
    %v100 = vld [vmem:[#allocation2 + $0xc8] sm:$0xf]
    %v101 = vld [vmem:[#allocation2 + $0xcc] sm:$0xf]
    %v102 = vld [vmem:[#allocation2 + $0xd0] sm:$0xf]
    %v103 = vld [vmem:[#allocation2 + $0xd4] sm:$0xf]
    %v104 = vld [vmem:[#allocation2 + $0xd8] sm:$0xf]
    %v105 = vld [vmem:[#allocation2 + $0xdc] sm:$0xf]
    %v106 = vld [vmem:[#allocation2 + $0xe0] sm:$0xf]
    %v107 = vld [vmem:[#allocation2 + $0xe4] sm:$0xf]
    %v108 = vld [vmem:[#allocation2 + $0xe8] sm:$0xf]
    %v109 = vld [vmem:[#allocation2 + $0xec] sm:$0xf]
    %v110 = vld [vmem:[#allocation2 + $0xf0] sm:$0xf]
    %v111 = vld [vmem:[#allocation2 + $0xf4] sm:$0xf]
    %v112 = vld [vmem:[#allocation2 + $0xf8] sm:$0xf]
    %v113 = vld [vmem:[#allocation2 + $0xfc] sm:$0xf]
    %v114 = vld [vmem:[#allocation2 + $0x100] sm:$0xf]
    %v115 = vld [vmem:[#allocation2 + $0x104] sm:$0xf]
    %v116 = vld [vmem:[#allocation2 + $0x108] sm:$0xf]
    %v117 = vld [vmem:[#allocation2 + $0x10c] sm:$0xf]
    %v118 = vld [vmem:[#allocation2 + $0x110] sm:$0xf]
    %v119 = vld [vmem:[#allocation2 + $0x114] sm:$0xf]
    %v120 = vld [vmem:[#allocation2 + $0x118] sm:$0xf]
    %v121 = vld [vmem:[#allocation2 + $0x11c] sm:$0xf]
    %v122 = vld [vmem:[#allocation2 + $0x120] sm:$0xf]
    %v123 = vld [vmem:[#allocation2 + $0x124] sm:$0xf]
    %v124 = vld [vmem:[#allocation2 + $0x128] sm:$0xf]
    %v125 = vld [vmem:[#allocation2 + $0x12c] sm:$0xf]
    %v126 = vld [vmem:[#allocation2 + $0x130] sm:$0xf]
    %v127 = vld [vmem:[#allocation2 + $0x134] sm:$0xf]
    %v128 = vld [vmem:[#allocation2 + $0x138] sm:$0xf]
    %v129 = vld [vmem:[#allocation2 + $0x13c] sm:$0xf]
    %v130 = vld [vmem:[#allocation2 + $0x140] sm:$0xf]
    %v131 = vld [vmem:[#allocation2 + $0x144] sm:$0xf]
    %v132 = vld [vmem:[#allocation2 + $0x148] sm:$0xf]
    %v133 = vld [vmem:[#allocation2 + $0x14c] sm:$0xf]
    %v134 = vld [vmem:[#allocation2 + $0x150] sm:$0xf]
    %v135 = vld [vmem:[#allocation2 + $0x154] sm:$0xf]
    %v136 = vld [vmem:[#allocation2 + $0x158] sm:$0xf]
    %v137 = vld [vmem:[#allocation2 + $0x15c] sm:$0xf]
    %v138 = vld [vmem:[#allocation2 + $0x160] sm:$0xf]
    %v139 = vld [vmem:[#allocation2 + $0x164] sm:$0xf]
    %v140 = vld [vmem:[#allocation2 + $0x168] sm:$0xf]
    %v141 = vld [vmem:[#allocation2 + $0x16c] sm:$0xf]
    %v142 = vld [vmem:[#allocation2 + $0x170] sm:$0xf]
    %v143 = vld [vmem:[#allocation2 + $0x174] sm:$0xf]
    %v144 = vld [vmem:[#allocation2 + $0x178] sm:$0xf]
    %v145 = vld [vmem:[#allocation2 + $0x17c] sm:$0xf]
    %v146 = vld [vmem:[#allocation2 + $0x180] sm:$0xf]
    %v147 = vld [vmem:[#allocation2 + $0x184] sm:$0xf]
    %v148 = vld [vmem:[#allocation2 + $0x188] sm:$0xf]
    %v149 = vld [vmem:[#allocation2 + $0x18c] sm:$0xf]
    %v150 = vld [vmem:[#allocation2 + $0x190] sm:$0xf]
    %v151 = vld [vmem:[#allocation2 + $0x194] sm:$0xf]
    %v152 = vld [vmem:[#allocation2 + $0x198] sm:$0xf]
    %v153 = vld [vmem:[#allocation2 + $0x19c] sm:$0xf]
    %v154 = vld [vmem:[#allocation2 + $0x1a0] sm:$0xf]
    %v155 = vld [vmem:[#allocation2 + $0x1a4] sm:$0xf]
    %v156 = vld [vmem:[#allocation2 + $0x1a8] sm:$0xf]
    %v157 = vld [vmem:[#allocation2 + $0x1ac] sm:$0xf]
    %v158 = vld [vmem:[#allocation2 + $0x1b0] sm:$0xf]
    %v159 = vld [vmem:[#allocation2 + $0x1b4] sm:$0xf]
    %v160 = vld [vmem:[#allocation2 + $0x1b8] sm:$0xf]
    %v161 = vld [vmem:[#allocation2 + $0x1bc] sm:$0xf]
    %v162 = vld [vmem:[#allocation2 + $0x1c0] sm:$0xf]
    %v163 = vld [vmem:[#allocation2 + $0x1c4] sm:$0xf]
    %v164 = vld [vmem:[#allocation2 + $0x1c8] sm:$0xf]
    %v165 = vld [vmem:[#allocation2 + $0x1cc] sm:$0xf]
    %v166 = vld [vmem:[#allocation2 + $0x1d0] sm:$0xf]
    %v167 = vld [vmem:[#allocation2 + $0x1d4] sm:$0xf]
    %v168 = vld [vmem:[#allocation2 + $0x1d8] sm:$0xf]
    %v169 = vld [vmem:[#allocation2 + $0x1dc] sm:$0xf]
    %v170 = vld [vmem:[#allocation2 + $0x1e0] sm:$0xf]
    %v171 = vld [vmem:[#allocation2 + $0x1e4] sm:$0xf]
    %v172 = vld [vmem:[#allocation2 + $0x1e8] sm:$0xf]
    %v173 = vld [vmem:[#allocation2 + $0x1ec] sm:$0xf]
    %v174 = vld [vmem:[#allocation2 + $0x1f0] sm:$0xf]
    %v175 = vld [vmem:[#allocation2 + $0x1f4] sm:$0xf]
    %v176 = vld [vmem:[#allocation2 + $0x1f8] sm:$0xf]
    %v177 = vld [vmem:[#allocation2 + $0x1fc] sm:$0xf]
    %v186 = vunpack.c.l.b16 %v42
    %v187 = vunpack.c.h.b16 %v42
    %v188 = vunpack.c.l.b16 %v43
    %v189 = vunpack.c.h.b16 %v43
    %v190 = vunpack.c.l.b16 %v44
    %v191 = vunpack.c.h.b16 %v44
    %v192 = vunpack.c.l.b16 %v45
    %v193 = vunpack.c.h.b16 %v45
    %v194 = vunpack.c.l.b16 %v46
    %v195 = vunpack.c.h.b16 %v46
    %v196 = vunpack.c.l.b16 %v47
    %v197 = vunpack.c.h.b16 %v47
    %v198 = vunpack.c.l.b16 %v48
    %v199 = vunpack.c.h.b16 %v48
    %v200 = vunpack.c.l.b16 %v49
    %v201 = vunpack.c.h.b16 %v49
    %v202 = vpack.c.b16 %v194, %v186
    %v203 = vpack.c.b16 %v195, %v187
    %v204 = vpack.c.b16 %v196, %v188
    %v205 = vpack.c.b16 %v197, %v189
    %v206 = vpack.c.b16 %v198, %v190
    %v207 = vpack.c.b16 %v199, %v191
    %v208 = vpack.c.b16 %v200, %v192
    %v209 = vpack.c.b16 %v201, %v193
    %v346 = vunpack.c.l.b16 %v50
    %v347 = vunpack.c.l.b16 %v51
    %v348 = vunpack.c.l.b16 %v52
    %v349 = vunpack.c.l.b16 %v53
    %v350 = vunpack.c.l.b16 %v54
    %v351 = vunpack.c.l.b16 %v55
    %v352 = vunpack.c.l.b16 %v56
    %v353 = vunpack.c.l.b16 %v57
    %v354 = vunpack.c.l.b16 %v58
    %v355 = vunpack.c.l.b16 %v59
    %v356 = vunpack.c.l.b16 %v60
    %v357 = vunpack.c.l.b16 %v61
    %v358 = vunpack.c.l.b16 %v62
    %v359 = vunpack.c.l.b16 %v63
    %v360 = vunpack.c.l.b16 %v64
    %v361 = vunpack.c.l.b16 %v65
    %v362 = vunpack.c.l.b16 %v66
    %v363 = vunpack.c.l.b16 %v67
    %v364 = vunpack.c.l.b16 %v68
    %v365 = vunpack.c.l.b16 %v69
    %v366 = vunpack.c.l.b16 %v70
    %v367 = vunpack.c.l.b16 %v71
    %v368 = vunpack.c.l.b16 %v72
    %v369 = vunpack.c.l.b16 %v73
    %v370 = vunpack.c.l.b16 %v74
    %v371 = vunpack.c.l.b16 %v75
    %v372 = vunpack.c.l.b16 %v76
    %v373 = vunpack.c.l.b16 %v77
    %v374 = vunpack.c.l.b16 %v78
    %v375 = vunpack.c.l.b16 %v79
    %v376 = vunpack.c.l.b16 %v80
    %v377 = vunpack.c.l.b16 %v81
    %v378 = vunpack.c.l.b16 %v82
    %v379 = vunpack.c.l.b16 %v83
    %v380 = vunpack.c.l.b16 %v84
    %v381 = vunpack.c.l.b16 %v85
    %v382 = vunpack.c.l.b16 %v86
    %v383 = vunpack.c.l.b16 %v87
    %v384 = vunpack.c.l.b16 %v88
    %v385 = vunpack.c.l.b16 %v89
    %v386 = vunpack.c.l.b16 %v90
    %v387 = vunpack.c.l.b16 %v91
    %v388 = vunpack.c.l.b16 %v92
    %v389 = vunpack.c.l.b16 %v93
    %v390 = vunpack.c.l.b16 %v94
    %v391 = vunpack.c.l.b16 %v95
    %v392 = vunpack.c.l.b16 %v96
    %v393 = vunpack.c.l.b16 %v97
    %v394 = vunpack.c.l.b16 %v98
    %v395 = vunpack.c.l.b16 %v99
    %v396 = vunpack.c.l.b16 %v100
    %v397 = vunpack.c.l.b16 %v101
    %v398 = vunpack.c.l.b16 %v102
    %v399 = vunpack.c.l.b16 %v103
    %v400 = vunpack.c.l.b16 %v104
    %v401 = vunpack.c.l.b16 %v105
    %v402 = vunpack.c.l.b16 %v106
    %v403 = vunpack.c.l.b16 %v107
    %v404 = vunpack.c.l.b16 %v108
    %v405 = vunpack.c.l.b16 %v109
    %v406 = vunpack.c.l.b16 %v110
    %v407 = vunpack.c.l.b16 %v111
    %v408 = vunpack.c.l.b16 %v112
    %v409 = vunpack.c.l.b16 %v113
    %v410 = vunpack.c.l.b16 %v114
    %v411 = vunpack.c.l.b16 %v115
    %v412 = vunpack.c.l.b16 %v116
    %v413 = vunpack.c.l.b16 %v117
    %v414 = vunpack.c.l.b16 %v118
    %v415 = vunpack.c.l.b16 %v119
    %v416 = vunpack.c.l.b16 %v120
    %v417 = vunpack.c.l.b16 %v121
    %v418 = vunpack.c.l.b16 %v122
    %v419 = vunpack.c.l.b16 %v123
    %v420 = vunpack.c.l.b16 %v124
    %v421 = vunpack.c.l.b16 %v125
    %v422 = vunpack.c.l.b16 %v126
    %v423 = vunpack.c.l.b16 %v127
    %v424 = vunpack.c.l.b16 %v128
    %v425 = vunpack.c.l.b16 %v129
    %v426 = vunpack.c.l.b16 %v130
    %v427 = vunpack.c.l.b16 %v131
    %v428 = vunpack.c.l.b16 %v132
    %v429 = vunpack.c.l.b16 %v133
    %v430 = vunpack.c.l.b16 %v134
    %v431 = vunpack.c.l.b16 %v135
    %v432 = vunpack.c.l.b16 %v136
    %v433 = vunpack.c.l.b16 %v137
    %v434 = vunpack.c.l.b16 %v138
    %v435 = vunpack.c.l.b16 %v139
    %v436 = vunpack.c.l.b16 %v140
    %v437 = vunpack.c.l.b16 %v141
    %v438 = vunpack.c.l.b16 %v142
    %v439 = vunpack.c.l.b16 %v143
    %v440 = vunpack.c.l.b16 %v144
    %v441 = vunpack.c.l.b16 %v145
    %v442 = vunpack.c.l.b16 %v146
    %v443 = vunpack.c.l.b16 %v147
    %v444 = vunpack.c.l.b16 %v148
    %v445 = vunpack.c.l.b16 %v149
    %v446 = vunpack.c.l.b16 %v150
    %v447 = vunpack.c.l.b16 %v151
    %v448 = vunpack.c.l.b16 %v152
    %v449 = vunpack.c.l.b16 %v153
    %v450 = vunpack.c.l.b16 %v154
    %v451 = vunpack.c.l.b16 %v155
    %v452 = vunpack.c.l.b16 %v156
    %v453 = vunpack.c.l.b16 %v157
    %v454 = vunpack.c.l.b16 %v158
    %v455 = vunpack.c.l.b16 %v159
    %v456 = vunpack.c.l.b16 %v160
    %v457 = vunpack.c.l.b16 %v161
    %v458 = vunpack.c.l.b16 %v162
    %v459 = vunpack.c.l.b16 %v163
    %v460 = vunpack.c.l.b16 %v164
    %v461 = vunpack.c.l.b16 %v165
    %v462 = vunpack.c.l.b16 %v166
    %v463 = vunpack.c.l.b16 %v167
    %v464 = vunpack.c.l.b16 %v168
    %v465 = vunpack.c.l.b16 %v169
    %v466 = vunpack.c.l.b16 %v170
    %v467 = vunpack.c.l.b16 %v171
    %v468 = vunpack.c.l.b16 %v172
    %v469 = vunpack.c.l.b16 %v173
    %v470 = vunpack.c.l.b16 %v174
    %v471 = vunpack.c.l.b16 %v175
    %v472 = vunpack.c.l.b16 %v176
    %v473 = vunpack.c.l.b16 %v177
    %v474 = vpack.c.b16 %v347, %v346
    %v475 = vpack.c.b16 %v349, %v348
    %v476 = vpack.c.b16 %v351, %v350
    %v477 = vpack.c.b16 %v353, %v352
    %v478 = vpack.c.b16 %v355, %v354
    %v479 = vpack.c.b16 %v357, %v356
    %v480 = vpack.c.b16 %v359, %v358
    %v481 = vpack.c.b16 %v361, %v360
    %v482 = vpack.c.b16 %v363, %v362
    %v483 = vpack.c.b16 %v365, %v364
    %v484 = vpack.c.b16 %v367, %v366
    %v485 = vpack.c.b16 %v369, %v368
    %v486 = vpack.c.b16 %v371, %v370
    %v487 = vpack.c.b16 %v373, %v372
    %v488 = vpack.c.b16 %v375, %v374
    %v489 = vpack.c.b16 %v377, %v376
    %v490 = vpack.c.b16 %v379, %v378
    %v491 = vpack.c.b16 %v381, %v380
    %v492 = vpack.c.b16 %v383, %v382
    %v493 = vpack.c.b16 %v385, %v384
    %v494 = vpack.c.b16 %v387, %v386
    %v495 = vpack.c.b16 %v389, %v388
    %v496 = vpack.c.b16 %v391, %v390
    %v497 = vpack.c.b16 %v393, %v392
    %v498 = vpack.c.b16 %v395, %v394
    %v499 = vpack.c.b16 %v397, %v396
    %v500 = vpack.c.b16 %v399, %v398
    %v501 = vpack.c.b16 %v401, %v400
    %v502 = vpack.c.b16 %v403, %v402
    %v503 = vpack.c.b16 %v405, %v404
    %v504 = vpack.c.b16 %v407, %v406
    %v505 = vpack.c.b16 %v409, %v408
    %v506 = vpack.c.b16 %v411, %v410
    %v507 = vpack.c.b16 %v413, %v412
    %v508 = vpack.c.b16 %v415, %v414
    %v509 = vpack.c.b16 %v417, %v416
    %v510 = vpack.c.b16 %v419, %v418
    %v511 = vpack.c.b16 %v421, %v420
    %v512 = vpack.c.b16 %v423, %v422
    %v513 = vpack.c.b16 %v425, %v424
    %v514 = vpack.c.b16 %v427, %v426
    %v515 = vpack.c.b16 %v429, %v428
    %v516 = vpack.c.b16 %v431, %v430
    %v517 = vpack.c.b16 %v433, %v432
    %v518 = vpack.c.b16 %v435, %v434
    %v519 = vpack.c.b16 %v437, %v436
    %v520 = vpack.c.b16 %v439, %v438
    %v521 = vpack.c.b16 %v441, %v440
    %v522 = vpack.c.b16 %v443, %v442
    %v523 = vpack.c.b16 %v445, %v444
    %v524 = vpack.c.b16 %v447, %v446
    %v525 = vpack.c.b16 %v449, %v448
    %v526 = vpack.c.b16 %v451, %v450
    %v527 = vpack.c.b16 %v453, %v452
    %v528 = vpack.c.b16 %v455, %v454
    %v529 = vpack.c.b16 %v457, %v456
    %v530 = vpack.c.b16 %v459, %v458
    %v531 = vpack.c.b16 %v461, %v460
    %v532 = vpack.c.b16 %v463, %v462
    %v533 = vpack.c.b16 %v465, %v464
    %v534 = vpack.c.b16 %v467, %v466
    %v535 = vpack.c.b16 %v469, %v468
    %v536 = vpack.c.b16 %v471, %v470
    %v537 = vpack.c.b16 %v473, %v472
    %602 = vmatprep.subr.bf16.mxu0 0
    %603 = vmatpush1.bf16.msra.mxu0 %v481
    %604 = vmatprep.subr.bf16.mxu0 0
    %605 = vmatpush1.bf16.msra.mxu0 %v480
    %606 = vmatprep.subr.bf16.mxu0 0
    %607 = vmatpush1.bf16.msra.mxu0 %v479
    %608 = vmatprep.subr.bf16.mxu0 0
    %609 = vmatpush1.bf16.msra.mxu0 %v478
    %610 = vmatprep.subr.bf16.mxu0 0
    %611 = vmatpush1.bf16.msra.mxu0 %v477
    %612 = vmatprep.subr.bf16.mxu0 0
    %613 = vmatpush1.bf16.msra.mxu0 %v476
    %614 = vmatprep.subr.bf16.mxu0 0
    %615 = vmatpush1.bf16.msra.mxu0 %v475
    %616 = vmatprep.subr.bf16.mxu0 0
    %617 = vmatpush1.bf16.msra.mxu0 %v474
    %618 = vmatprep.subr.bf16.mxu0 0
    %619 = vmatpush2.bf16.msra.mxu0 %v489
    %620 = vmatprep.subr.bf16.mxu0 0
    %621 = vmatpush2.bf16.msra.mxu0 %v488
    %622 = vmatprep.subr.bf16.mxu0 0
    %623 = vmatpush2.bf16.msra.mxu0 %v487
    %624 = vmatprep.subr.bf16.mxu0 0
    %625 = vmatpush2.bf16.msra.mxu0 %v486
    %626 = vmatprep.subr.bf16.mxu0 0
    %627 = vmatpush2.bf16.msra.mxu0 %v485
    %628 = vmatprep.subr.bf16.mxu0 0
    %629 = vmatpush2.bf16.msra.mxu0 %v484
    %630 = vmatprep.subr.bf16.mxu0 0
    %631 = vmatpush2.bf16.msra.mxu0 %v483
    %632 = vmatprep.subr.bf16.mxu0 0
    %633 = vmatpush2.bf16.msra.mxu0 %v482
    %634 = vmatprep.mubr.bf16.mxu0 %v203
    %635 = vmatmul.mubr.bf16.gmra.mxu0 %v202
    %v636 = vpop.f32.mrf.mxu0
    %v637 = vadd.f32 0.0, %v636
    %v638 = vpop.f32.mrf.mxu0
    %v639 = vpop.f32.mrf.mxu0
    %v640 = vadd.f32 0.0, %v639
    %v641 = vpop.f32.mrf.mxu0
    %642 = vdwg.mxu0
    %643 = vmatprep.subr.bf16.mxu0 0
    %644 = vmatpush1.bf16.msra.mxu0 %v497
    %645 = vmatprep.subr.bf16.mxu0 0
    %646 = vmatpush1.bf16.msra.mxu0 %v496
    %647 = vmatprep.subr.bf16.mxu0 0
    %648 = vmatpush1.bf16.msra.mxu0 %v495
    %649 = vmatprep.subr.bf16.mxu0 0
    %650 = vmatpush1.bf16.msra.mxu0 %v494
    %651 = vmatprep.subr.bf16.mxu0 0
    %652 = vmatpush1.bf16.msra.mxu0 %v493
    %653 = vmatprep.subr.bf16.mxu0 0
    %654 = vmatpush1.bf16.msra.mxu0 %v492
    %655 = vmatprep.subr.bf16.mxu0 0
    %656 = vmatpush1.bf16.msra.mxu0 %v491
    %657 = vmatprep.subr.bf16.mxu0 0
    %658 = vmatpush1.bf16.msra.mxu0 %v490
    %659 = vmatprep.subr.bf16.mxu0 0
    %660 = vmatpush2.bf16.msra.mxu0 %v505
    %661 = vmatprep.subr.bf16.mxu0 0
    %662 = vmatpush2.bf16.msra.mxu0 %v504
    %663 = vmatprep.subr.bf16.mxu0 0
    %664 = vmatpush2.bf16.msra.mxu0 %v503
    %665 = vmatprep.subr.bf16.mxu0 0
    %666 = vmatpush2.bf16.msra.mxu0 %v502
    %667 = vmatprep.subr.bf16.mxu0 0
    %668 = vmatpush2.bf16.msra.mxu0 %v501
    %669 = vmatprep.subr.bf16.mxu0 0
    %670 = vmatpush2.bf16.msra.mxu0 %v500
    %671 = vmatprep.subr.bf16.mxu0 0
    %672 = vmatpush2.bf16.msra.mxu0 %v499
    %673 = vmatprep.subr.bf16.mxu0 0
    %674 = vmatpush2.bf16.msra.mxu0 %v498
    %675 = vmatprep.mubr.bf16.mxu0 %v205
    %676 = vmatmul.mubr.bf16.gmra.mxu0 %v204
    %v677 = vpop.f32.mrf.mxu0
    %v678 = vadd.f32 %v637, %v677
    %v679 = vpop.f32.mrf.mxu0
    %v680 = vpop.f32.mrf.mxu0
    %v681 = vadd.f32 %v640, %v680
    %v682 = vpop.f32.mrf.mxu0
    %683 = vdwg.mxu0
    %684 = vmatprep.subr.bf16.mxu0 0
    %685 = vmatpush1.bf16.msra.mxu0 %v513
    %686 = vmatprep.subr.bf16.mxu0 0
    %687 = vmatpush1.bf16.msra.mxu0 %v512
    %688 = vmatprep.subr.bf16.mxu0 0
    %689 = vmatpush1.bf16.msra.mxu0 %v511
    %690 = vmatprep.subr.bf16.mxu0 0
    %691 = vmatpush1.bf16.msra.mxu0 %v510
    %692 = vmatprep.subr.bf16.mxu0 0
    %693 = vmatpush1.bf16.msra.mxu0 %v509
    %694 = vmatprep.subr.bf16.mxu0 0
    %695 = vmatpush1.bf16.msra.mxu0 %v508
    %696 = vmatprep.subr.bf16.mxu0 0
    %697 = vmatpush1.bf16.msra.mxu0 %v507
    %698 = vmatprep.subr.bf16.mxu0 0
    %699 = vmatpush1.bf16.msra.mxu0 %v506
    %700 = vmatprep.subr.bf16.mxu0 0
    %701 = vmatpush2.bf16.msra.mxu0 %v521
    %702 = vmatprep.subr.bf16.mxu0 0
    %703 = vmatpush2.bf16.msra.mxu0 %v520
    %704 = vmatprep.subr.bf16.mxu0 0
    %705 = vmatpush2.bf16.msra.mxu0 %v519
    %706 = vmatprep.subr.bf16.mxu0 0
    %707 = vmatpush2.bf16.msra.mxu0 %v518
    %708 = vmatprep.subr.bf16.mxu0 0
    %709 = vmatpush2.bf16.msra.mxu0 %v517
    %710 = vmatprep.subr.bf16.mxu0 0
    %711 = vmatpush2.bf16.msra.mxu0 %v516
    %712 = vmatprep.subr.bf16.mxu0 0
    %713 = vmatpush2.bf16.msra.mxu0 %v515
    %714 = vmatprep.subr.bf16.mxu0 0
    %715 = vmatpush2.bf16.msra.mxu0 %v514
    %716 = vmatprep.mubr.bf16.mxu0 %v207
    %717 = vmatmul.mubr.bf16.gmra.mxu0 %v206
    %v718 = vpop.f32.mrf.mxu0
    %v719 = vadd.f32 %v678, %v718
    %v720 = vpop.f32.mrf.mxu0
    %v721 = vpop.f32.mrf.mxu0
    %v722 = vadd.f32 %v681, %v721
    %v723 = vpop.f32.mrf.mxu0
    %724 = vdwg.mxu0
    %725 = vmatprep.subr.bf16.mxu0 0
    %726 = vmatpush1.bf16.msra.mxu0 %v529
    %727 = vmatprep.subr.bf16.mxu0 0
    %728 = vmatpush1.bf16.msra.mxu0 %v528
    %729 = vmatprep.subr.bf16.mxu0 0
    %730 = vmatpush1.bf16.msra.mxu0 %v527
    %731 = vmatprep.subr.bf16.mxu0 0
    %732 = vmatpush1.bf16.msra.mxu0 %v526
    %733 = vmatprep.subr.bf16.mxu0 0
    %734 = vmatpush1.bf16.msra.mxu0 %v525
    %735 = vmatprep.subr.bf16.mxu0 0
    %736 = vmatpush1.bf16.msra.mxu0 %v524
    %737 = vmatprep.subr.bf16.mxu0 0
    %738 = vmatpush1.bf16.msra.mxu0 %v523
    %739 = vmatprep.subr.bf16.mxu0 0
    %740 = vmatpush1.bf16.msra.mxu0 %v522
    %741 = vmatprep.subr.bf16.mxu0 0
    %742 = vmatpush2.bf16.msra.mxu0 %v537
    %743 = vmatprep.subr.bf16.mxu0 0
    %744 = vmatpush2.bf16.msra.mxu0 %v536
    %745 = vmatprep.subr.bf16.mxu0 0
    %746 = vmatpush2.bf16.msra.mxu0 %v535
    %747 = vmatprep.subr.bf16.mxu0 0
    %748 = vmatpush2.bf16.msra.mxu0 %v534
    %749 = vmatprep.subr.bf16.mxu0 0
    %750 = vmatpush2.bf16.msra.mxu0 %v533
    %751 = vmatprep.subr.bf16.mxu0 0
    %752 = vmatpush2.bf16.msra.mxu0 %v532
    %753 = vmatprep.subr.bf16.mxu0 0
    %754 = vmatpush2.bf16.msra.mxu0 %v531
    %755 = vmatprep.subr.bf16.mxu0 0
    %756 = vmatpush2.bf16.msra.mxu0 %v530
    %757 = vmatprep.mubr.bf16.mxu0 %v209
    %758 = vmatmul.mubr.bf16.gmra.mxu0 %v208
    %v759 = vpop.f32.mrf.mxu0
    %v760 = vadd.f32 %v719, %v759
    %v761 = vpop.f32.mrf.mxu0
    %v762 = vpop.f32.mrf.mxu0
    %v763 = vadd.f32 %v722, %v762
    %v764 = vpop.f32.mrf.mxu0
    %765 = vdwg.mxu0
    %v766 = vmul.f32 %v760, %v40
    %v767 = vmul.f32 %v763, %v41
    %v768 = vadd.f32 %v766, %v767
    %v769 = vrot.slane %v768, 4
    %v770 = vadd.f32 %v768, %v769
    %v771 = vrot.slane %v770, 2
    %v772 = vadd.f32 %v770, %v771
    %v773 = vrot.slane %v772, 1
    %v774 = vadd.f32 %v772, %v773
    %v775 = vsub.f32 %v760, %v774
    %v776 = vsub.f32 %v763, %v774
    %v777 = vmul.f32 %v775, %v775
    %v778 = vmul.f32 %v776, %v776
    %v779 = vmul.f32 %v777, %v40
    %v780 = vmul.f32 %v778, %v41
    %v781 = vadd.f32 %v779, %v780
    %v782 = vrot.slane %v781, 4
    %v783 = vadd.f32 %v781, %v782
    %v784 = vrot.slane %v783, 2
    %v785 = vadd.f32 %v783, %v784
    %v786 = vrot.slane %v785, 1
    %v787 = vadd.f32 %v785, %v786
    %v788 = vadd.f32 %v787, 1e-05
    %v789 = vrsqrt.pop %v788
    %v790 = vmul.f32 %v775, %v789
    %v791 = vmul.f32 %v776, %v789
    %v792 = vmax.f32 %v790, 0.0
    %v793 = vmax.f32 %v791, 0.0
    %v794 = vpack.c.bf16 %v793, %v792
    %v795 = vld [vmem:[%s2] sm:$0xf]
    %v796 = vld [vmem:[%s2 + $0x4] sm:$0xf]
    %v797 = vld [vmem:[%s2 + $0x8] sm:$0xf]
    %v798 = vld [vmem:[%s2 + $0xc] sm:$0xf]
    %v799 = vld [vmem:[%s2 + $0x10] sm:$0xf]
    %v800 = vld [vmem:[%s2 + $0x14] sm:$0xf]
    %v801 = vld [vmem:[%s2 + $0x18] sm:$0xf]
    %v802 = vld [vmem:[%s2 + $0x1c] sm:$0xf]
    %v803 = vld [vmem:[%s2 + $0x20] sm:$0xf]
    %v804 = vld [vmem:[%s2 + $0x24] sm:$0xf]
    %v805 = vld [vmem:[%s2 + $0x28] sm:$0xf]
    %v806 = vld [vmem:[%s2 + $0x2c] sm:$0xf]
    %v807 = vld [vmem:[%s2 + $0x30] sm:$0xf]
    %v808 = vld [vmem:[%s2 + $0x34] sm:$0xf]
    %v809 = vld [vmem:[%s2 + $0x38] sm:$0xf]
    %v810 = vld [vmem:[%s2 + $0x3c] sm:$0xf]
    %v827 = vunpack.c.l.b16 %v795
    %v828 = vunpack.c.l.b16 %v796
    %v829 = vunpack.c.l.b16 %v797
    %v830 = vunpack.c.l.b16 %v798
    %v831 = vunpack.c.l.b16 %v799
    %v832 = vunpack.c.l.b16 %v800
    %v833 = vunpack.c.l.b16 %v801
    %v834 = vunpack.c.l.b16 %v802
    %v835 = vunpack.c.l.b16 %v803
    %v836 = vunpack.c.l.b16 %v804
    %v837 = vunpack.c.l.b16 %v805
    %v838 = vunpack.c.l.b16 %v806
    %v839 = vunpack.c.l.b16 %v807
    %v840 = vunpack.c.l.b16 %v808
    %v841 = vunpack.c.l.b16 %v809
    %v842 = vunpack.c.l.b16 %v810
    %v843 = vpack.c.b16 %v828, %v827
    %v844 = vpack.c.b16 %v830, %v829
    %v845 = vpack.c.b16 %v832, %v831
    %v846 = vpack.c.b16 %v834, %v833
    %v847 = vpack.c.b16 %v836, %v835
    %v848 = vpack.c.b16 %v838, %v837
    %v849 = vpack.c.b16 %v840, %v839
    %v850 = vpack.c.b16 %v842, %v841
    %859 = vmatprep.subr.bf16.mxu0 0
    %860 = vmatpush1.bf16.msra.mxu0 %v850
    %861 = vmatprep.subr.bf16.mxu0 0
    %862 = vmatpush1.bf16.msra.mxu0 %v849
    %863 = vmatprep.subr.bf16.mxu0 0
    %864 = vmatpush1.bf16.msra.mxu0 %v848
    %865 = vmatprep.subr.bf16.mxu0 0
    %866 = vmatpush1.bf16.msra.mxu0 %v847
    %867 = vmatprep.subr.bf16.mxu0 0
    %868 = vmatpush1.bf16.msra.mxu0 %v846
    %869 = vmatprep.subr.bf16.mxu0 0
    %870 = vmatpush1.bf16.msra.mxu0 %v845
    %871 = vmatprep.subr.bf16.mxu0 0
    %872 = vmatpush1.bf16.msra.mxu0 %v844
    %873 = vmatprep.subr.bf16.mxu0 0
    %874 = vmatpush1.bf16.msra.mxu0 %v843
    %875 = vmatprep.subr.bf16.mxu0 0
    %876 = vmatpush2.bf16.msra.mxu0 0
    %877 = vmatprep.subr.bf16.mxu0 0
    %878 = vmatpush2.bf16.msra.mxu0 0
    %879 = vmatprep.subr.bf16.mxu0 0
    %880 = vmatpush2.bf16.msra.mxu0 0
    %881 = vmatprep.subr.bf16.mxu0 0
    %882 = vmatpush2.bf16.msra.mxu0 0
    %883 = vmatprep.subr.bf16.mxu0 0
    %884 = vmatpush2.bf16.msra.mxu0 0
    %885 = vmatprep.subr.bf16.mxu0 0
    %886 = vmatpush2.bf16.msra.mxu0 0
    %887 = vmatprep.subr.bf16.mxu0 0
    %888 = vmatpush2.bf16.msra.mxu0 0
    %889 = vmatprep.subr.bf16.mxu0 0
    %890 = vmatpush2.bf16.msra.mxu0 0
    %891 = vmatprep.mubr.bf16.mxu0 0
    %892 = vmatmul.mubr.bf16.gmra.mxu0 %v794
    %v893 = vpop.f32.mrf.mxu0
    %v894 = vadd.f32 0.0, %v893
    %v895 = vpop.f32.mrf.mxu0
    %v896 = vpop.f32.mrf.mxu0
    %v897 = vadd.f32 0.0, %v896
    %v898 = vpop.f32.mrf.mxu0
    %899 = vdwg.mxu0
    %v900 = vmul.f32 %v894, %v40
    %v901 = vmul.f32 %v897, %v41
    %v902 = vadd.f32 %v900, %v901
    %v903 = vrot.slane %v902, 4
    %v904 = vadd.f32 %v902, %v903
    %v905 = vrot.slane %v904, 2
    %v906 = vadd.f32 %v904, %v905
    %v907 = vrot.slane %v906, 1
    %v908 = vadd.f32 %v906, %v907
    %v909 = vsub.f32 %v894, %v908
    %v910 = vsub.f32 %v897, %v908
    %v911 = vmul.f32 %v909, %v909
    %v912 = vmul.f32 %v910, %v910
    %v913 = vmul.f32 %v911, %v40
    %v914 = vmul.f32 %v912, %v41
    %v915 = vadd.f32 %v913, %v914
    %v916 = vrot.slane %v915, 4
    %v917 = vadd.f32 %v915, %v916
    %v918 = vrot.slane %v917, 2
    %v919 = vadd.f32 %v917, %v918
    %v920 = vrot.slane %v919, 1
    %v921 = vadd.f32 %v919, %v920
    %v922 = vadd.f32 %v921, 1e-05
    %v923 = vrsqrt.pop %v922
    %v924 = vmul.f32 %v909, %v923
    %v925 = vmul.f32 %v910, %v923
    %v926 = vmax.f32 %v924, 0.0
    %v927 = vmax.f32 %v925, 0.0
    %v928 = vpack.c.bf16 %v927, %v926
    %v929 = vld [vmem:[%s3] sm:$0xf]
    %v930 = vld [vmem:[%s3 + $0x4] sm:$0xf]
    %v931 = vld [vmem:[%s3 + $0x8] sm:$0xf]
    %v932 = vld [vmem:[%s3 + $0xc] sm:$0xf]
    %v933 = vld [vmem:[%s3 + $0x10] sm:$0xf]
    %v934 = vld [vmem:[%s3 + $0x14] sm:$0xf]
    %v935 = vld [vmem:[%s3 + $0x18] sm:$0xf]
    %v936 = vld [vmem:[%s3 + $0x1c] sm:$0xf]
    %v937 = vld [vmem:[%s3 + $0x20] sm:$0xf]
    %v938 = vld [vmem:[%s3 + $0x24] sm:$0xf]
    %v939 = vld [vmem:[%s3 + $0x28] sm:$0xf]
    %v940 = vld [vmem:[%s3 + $0x2c] sm:$0xf]
    %v941 = vld [vmem:[%s3 + $0x30] sm:$0xf]
    %v942 = vld [vmem:[%s3 + $0x34] sm:$0xf]
    %v943 = vld [vmem:[%s3 + $0x38] sm:$0xf]
    %v944 = vld [vmem:[%s3 + $0x3c] sm:$0xf]
    %v945 = vld [vmem:[%s4] sm:$0x1]
    %v947 = vlaneseq
    %v948 = vshrl.u32 %v947, 7
    %v949 = vsub.s32 0, %v948
    %v950 = vrot.slane %v945, %v949
    %v968 = vunpack.c.l.b16 %v929
    %v969 = vunpack.c.l.b16 %v930
    %v970 = vunpack.c.l.b16 %v931
    %v971 = vunpack.c.l.b16 %v932
    %v972 = vunpack.c.l.b16 %v933
    %v973 = vunpack.c.l.b16 %v934
    %v974 = vunpack.c.l.b16 %v935
    %v975 = vunpack.c.l.b16 %v936
    %v976 = vunpack.c.l.b16 %v937
    %v977 = vunpack.c.l.b16 %v938
    %v978 = vunpack.c.l.b16 %v939
    %v979 = vunpack.c.l.b16 %v940
    %v980 = vunpack.c.l.b16 %v941
    %v981 = vunpack.c.l.b16 %v942
    %v982 = vunpack.c.l.b16 %v943
    %v983 = vunpack.c.l.b16 %v944
    %v984 = vpack.c.b16 %v969, %v968
    %v985 = vpack.c.b16 %v971, %v970
    %v986 = vpack.c.b16 %v973, %v972
    %v987 = vpack.c.b16 %v975, %v974
    %v988 = vpack.c.b16 %v977, %v976
    %v989 = vpack.c.b16 %v979, %v978
    %v990 = vpack.c.b16 %v981, %v980
    %v991 = vpack.c.b16 %v983, %v982
    %1000 = vmatprep.subr.bf16.mxu0 0
    %1001 = vmatpush1.bf16.msra.mxu0 %v991
    %1002 = vmatprep.subr.bf16.mxu0 0
    %1003 = vmatpush1.bf16.msra.mxu0 %v990
    %1004 = vmatprep.subr.bf16.mxu0 0
    %1005 = vmatpush1.bf16.msra.mxu0 %v989
    %1006 = vmatprep.subr.bf16.mxu0 0
    %1007 = vmatpush1.bf16.msra.mxu0 %v988
    %1008 = vmatprep.subr.bf16.mxu0 0
    %1009 = vmatpush1.bf16.msra.mxu0 %v987
    %1010 = vmatprep.subr.bf16.mxu0 0
    %1011 = vmatpush1.bf16.msra.mxu0 %v986
    %1012 = vmatprep.subr.bf16.mxu0 0
    %1013 = vmatpush1.bf16.msra.mxu0 %v985
    %1014 = vmatprep.subr.bf16.mxu0 0
    %1015 = vmatpush1.bf16.msra.mxu0 %v984
    %1016 = vmatprep.subr.bf16.mxu0 0
    %1017 = vmatpush2.bf16.msra.mxu0 0
    %1018 = vmatprep.subr.bf16.mxu0 0
    %1019 = vmatpush2.bf16.msra.mxu0 0
    %1020 = vmatprep.subr.bf16.mxu0 0
    %1021 = vmatpush2.bf16.msra.mxu0 0
    %1022 = vmatprep.subr.bf16.mxu0 0
    %1023 = vmatpush2.bf16.msra.mxu0 0
    %1024 = vmatprep.subr.bf16.mxu0 0
    %1025 = vmatpush2.bf16.msra.mxu0 0
    %1026 = vmatprep.subr.bf16.mxu0 0
    %1027 = vmatpush2.bf16.msra.mxu0 0
    %1028 = vmatprep.subr.bf16.mxu0 0
    %1029 = vmatpush2.bf16.msra.mxu0 0
    %1030 = vmatprep.subr.bf16.mxu0 0
    %1031 = vmatpush2.bf16.msra.mxu0 0
    %1032 = vmatprep.mubr.bf16.mxu0 0
    %1033 = vmatmul.mubr.bf16.gmra.mxu0 %v928
    %v1034 = vpop.f32.mrf.mxu0
    %v1035 = vadd.f32 %v950, %v1034
    %v1036 = vpop.f32.mrf.mxu0
    %v1037 = vpop.f32.mrf.mxu0
    %v1038 = vadd.f32 %v950, %v1037
    %v1039 = vpop.f32.mrf.mxu0
    %1040 = vdwg.mxu0
    %1041 = vst [vmem:[%s5] sm:$0xff] %v1035
    %1042 = vst [vmem:[%s5 + $0x8] sm:$0xff] %v1038
    // Predicated region
    $region26: #{net_forward.1} parent=1 // pred_check
      _
    $region27: #{net_forward.1} parent=1 // pred_check_branch
      %1044 = sbr.rel (0) target = $region29
    $region28: #{net_forward.1} parent=1 // pred_region
      _
    $region29: #{net_forward.1} parent=1 // pred_fallthru
      _
    // Predicated region
    $region30: #{net_forward.1} parent=1 // pred_check
      _
    $region31: #{net_forward.1} parent=1 // pred_check_branch
      %1046 = sbr.rel (0) target = $region33
    $region32: #{net_forward.1} parent=1 // pred_region
      _
    $region33: #{net_forward.1} parent=1 // pred_fallthru
      _
    %1047 = vsyncpa [#allocation3], 1

</llo_original>
